<compile_context>
chip_gen: v7x
topology: tpu7x:2x2x1
jax: 0.10.0
libtpu: 0.0.40
codegen_flags: <defaults>
</compile_context>

<pallas_src>
import math
import functools

import jax
import jax.numpy as jnp
from jax.experimental import pallas as pl
from jax.experimental.pallas import tpu as pltpu

_LOG2 = math.log(2.0)


def _round_up(a, b):
    return ((a + b - 1) // b) * b


def _choose_tile_b(B, n, tile_b):
    """Lane-tile size: multiple of 128, VMEM-budgeted, >=2 tiles when possible."""
    tile_b = max(128, (int(tile_b) // 128) * 128)
    # never larger than the (128-rounded) batch
    tile_b = min(tile_b, _round_up(max(B, 1), 128))
    # v7x: keep at least 2 grid steps so both TensorCores get work
    if B > 128:
        tile_b = min(tile_b, _round_up(-(-B // 2), 128))
    # VMEM budget: double-buffered h tile + resident bias + x/log_prob buffers.
    # Stay well under the default scoped VMEM on every generation.
    budget = 8 * 1024 * 1024
    lane_bytes = 4 * (2 * 3 * n + 2 * 3 * n + 4)      # h (x2) + bias (x2) + x + logp
    cap = max(128, (budget // lane_bytes) // 128 * 128)
    return max(128, min(tile_b, cap))


def _cmpb_kernel(h_ref, x_ref, bias_ref, logp_ref, stats_ref, *,
                 n, n_row, res, lo, hi, s_lo, s_hi,
                 tile_b, num_tiles, rem, need_mask, log_space):
    # h_ref    : (3, n, TB)  -- [logit_pi | loc | log_s] x mixture x batch-lane
    # x_ref    : (1, TB)
    # bias_ref : (3, n, TB)  -- lane-replicated, resident (same block each step)
    # logp_ref : (1, TB)     -- lane-dense log_prob slab
    # stats_ref: (1, 7*n_row, 1) -- packed per-tile statistics (one DMA/step)
    lo_finite = math.isfinite(lo)
    hi_finite = math.isfinite(hi)

    logit_pi = h_ref[0] + bias_ref[0]                        # (n, TB)
    loc = h_ref[1] + bias_ref[1]                             # (n, TB)
    log_s = h_ref[2] + bias_ref[2]                           # (n, TB)

    # mixture softmax / log-softmax (shared by log_prob, entropy, stats)
    m = jnp.max(logit_pi, axis=0, keepdims=True)             # (1, TB)
    e = jnp.exp(logit_pi - m)                                # (n, TB)
    sum_e = jnp.sum(e, axis=0, keepdims=True)                # (1, TB)
    log_sum_e = jnp.log(sum_e)
    pi = e * (1.0 / sum_e)                                   # exact divide
    log_pi = (logit_pi - m) - log_sum_e

    # loc clamp -- skipped entirely for the default (+-inf) bounds
    if lo_finite:
        loc = jnp.maximum(loc, lo - 10.0 * res)
    if hi_finite:
        loc = jnp.minimum(loc, hi + 10.0 * res)

    # s = softplus(log_s).clamp(*sharp_bounds)  (stable softplus)
    sp = jnp.maximum(log_s, 0.0) + jnp.log1p(jnp.exp(-jnp.abs(log_s)))
    s = jnp.clip(sp, s_lo, s_hi)

    # censored pointy-logistic delta-CDF
    x = x_ref[...]                                           # (1, TB)
    if lo_finite:
        x = jnp.maximum(x, lo)
    if hi_finite:
        x = jnp.minimum(x, hi)
    xp = x + 0.5 * res
    xm = x - 0.5 * res
    zm = (xm - loc) * s                                      # (n, TB)
    zp = (xp - loc) * s

    if lo_finite:
        lo_c = x <= lo                                       # (1, TB)
        xm_ = jnp.where(lo_c, -1.0, zm)
        axm_ = jnp.where(lo_c, 0.0, jnp.abs(zm))
    else:
        xm_, axm_ = zm, jnp.abs(zm)
    if hi_finite:
        hi_c = x >= hi
        xp_ = jnp.where(hi_c, 1.0, zp)
        axp_ = jnp.where(hi_c, 0.0, jnp.abs(zp))
    else:
        xp_, axp_ = zp, jnp.abs(zp)

    num = xp_ - xm_ + xp_ * axm_ - axp_ * xm_                # = 2*dCDF*(1+den)
    den_m1 = axp_ + axm_ + axp_ * axm_

    if log_space:
        # exact logsumexp formulation (safe for far-tail log_probs < ~-87)
        z = log_pi + (jnp.log(num) - jnp.log1p(den_m1) - _LOG2)
        zmax = jnp.max(z, axis=0, keepdims=True)
        logp = jnp.log(jnp.sum(jnp.exp(z - zmax), axis=0, keepdims=True)) + zmax
    else:
        # linear-space path: ~3 fewer transcendentals per (n, TB) element
        delta2 = num / (1.0 + den_m1)                        # = 2 * delta_cdf
        prob2 = jnp.sum(e * delta2, axis=0, keepdims=True)   # (1, TB)
        logp = jnp.log(prob2) - log_sum_e - _LOG2
    logp_ref[...] = logp                                     # lane-dense store

    # per-row categorical entropy (guard 0*log 0, matches torch.Categorical)
    ent = -jnp.sum(jnp.where(pi > 0.0, pi * log_pi, 0.0),
                   axis=0, keepdims=True)                    # (1, TB)

    # packed per-tile statistics: one (7*n_row, 1) slab, one output DMA/step
    def write_stats(pi_v, smin_v, smax_v, lmin_v, lmax_v, emin_v, emax_v):
        stats_ref[0, 0 * n_row:0 * n_row + n, :] = jnp.sum(pi_v, axis=1, keepdims=True)
        stats_ref[0, 1 * n_row:1 * n_row + n, :] = jnp.min(smin_v, axis=1, keepdims=True)
        stats_ref[0, 2 * n_row:2 * n_row + n, :] = jnp.max(smax_v, axis=1, keepdims=True)
        stats_ref[0, 3 * n_row:3 * n_row + n, :] = jnp.min(lmin_v, axis=1, keepdims=True)
        stats_ref[0, 4 * n_row:4 * n_row + n, :] = jnp.max(lmax_v, axis=1, keepdims=True)
        stats_ref[0, 5 * n_row:5 * n_row + n, :] = jnp.broadcast_to(
            jnp.min(emin_v, axis=1, keepdims=True), (n, 1))
        stats_ref[0, 6 * n_row:6 * n_row + n, :] = jnp.broadcast_to(
            jnp.max(emax_v, axis=1, keepdims=True), (n, 1))

    if need_mask:
        is_last = pl.program_id(0) == (num_tiles - 1)

        @pl.when(jnp.logical_not(is_last))
        def _():                                             # interior tiles: no mask
            write_stats(pi, s, s, loc, loc, ent, ent)

        @pl.when(is_last)
        def _():                                             # edge tile: mask pad lanes
            lane = jax.lax.broadcasted_iota(jnp.int32, (1, tile_b), 1)
            valid = lane < rem
            write_stats(jnp.where(valid, pi, 0.0),
                        jnp.where(valid, s, jnp.inf), jnp.where(valid, s, -jnp.inf),
                        jnp.where(valid, loc, jnp.inf), jnp.where(valid, loc, -jnp.inf),
                        jnp.where(valid, ent, jnp.inf), jnp.where(valid, ent, -jnp.inf))
    else:
        write_stats(pi, s, s, loc, loc, ent, ent)


def censored_mixture_forward(h, x, bias, *, n, res=0.01,
                             lo=float("-inf"), hi=float("inf"),
                             sharp_bounds=(1e-5, 2000.0),
                             tile_b=4096, log_space=False):
    """Pallas implementation of CensoredMixturePointyBoi.forward.

    h: (B, 3n) float32, x: (B,) float32, bias: (3n,) float32.
    Returns a dict matching the PyTorch module's forward output.
    """
    B = h.shape[0]
    assert h.shape[-1] == 3 * n

    h = h.astype(jnp.float32)
    x = x.astype(jnp.float32)
    bias = bias.astype(jnp.float32)

    tile_b = _choose_tile_b(B, n, tile_b)
    num_tiles = -(-B // tile_b)
    rem = B - (num_tiles - 1) * tile_b
    need_mask = (rem != tile_b)
    n_row = _round_up(n, 8)                 # sublane-aligned stat-row stride

    # Layout plumbing: parameter group -> leading dim, mixture -> sublanes,
    # batch -> lanes.  No padding copy; the transpose is the only extra pass.
    hT = jnp.transpose(h.reshape(B, 3, n), (1, 2, 0))        # (3, n, B)
    x2 = x.reshape(1, B)
    bias_rep = jnp.broadcast_to(bias.reshape(3, n, 1), (3, n, tile_b))

    kernel = functools.partial(
        _cmpb_kernel, n=n, n_row=n_row, res=float(res),
        lo=float(lo), hi=float(hi),
        s_lo=float(sharp_bounds[0]), s_hi=float(sharp_bounds[1]),
        tile_b=tile_b, num_tiles=num_tiles, rem=rem,
        need_mask=need_mask, log_space=bool(log_space))

    out_shapes = (
        jax.ShapeDtypeStruct((1, B), jnp.float32),                    # log_prob
        jax.ShapeDtypeStruct((num_tiles, 7 * n_row, 1), jnp.float32),  # packed stats
    )

    logp, stats = pl.pallas_call(
        kernel,
        out_shape=out_shapes,
        grid_spec=pltpu.PrefetchScalarGridSpec(
            num_scalar_prefetch=0,
            grid=(num_tiles,),
            in_specs=[
                pl.BlockSpec((3, n, tile_b), lambda i: (0, 0, i)),    # h^T tile
                pl.BlockSpec((1, tile_b), lambda i: (0, i)),          # x tile
                pl.BlockSpec((3, n, tile_b), lambda i: (0, 0, 0)),    # bias (resident)
            ],
            out_specs=[
                pl.BlockSpec((1, tile_b), lambda i: (0, i)),          # log_prob
                pl.BlockSpec((1, 7 * n_row, 1), lambda i: (i, 0, 0)),  # stats
            ],
        ),
        compiler_params=pltpu.CompilerParams(
            dimension_semantics=("parallel",),
            allow_input_fusion=[True, True, True],
            vmem_limit_bytes=32 * 1024 * 1024),
    )(hT, x2, bias_rep)

    # unpack + tiny cross-tile scalar reductions (the torch.no_grad() block)
    st = stats.reshape(num_tiles, 7, n_row)[:, :, :n]
    pi_sum = st[:, 0]
    s_min, s_max = st[:, 1], st[:, 2]
    l_min, l_max = st[:, 3], st[:, 4]
    e_min, e_max = st[:, 5, 0], st[:, 6, 0]

    p_bar = jnp.sum(pi_sum, axis=0) / B
    p_bar = p_bar / jnp.sum(p_bar)
    marginal_entropy = -jnp.sum(p_bar * jnp.log(p_bar))

    return {
        "log_prob": logp[0],
        "min_sharpness": jnp.min(s_min),
        "max_sharpness": jnp.max(s_max),
        "min_entropy": jnp.min(e_min),
        "max_entropy": jnp.max(e_max),
        "marginal_entropy": marginal_entropy,
        "min_loc": jnp.min(l_min),
        "max_loc": jnp.max(l_max),
    }


def reference_forward(h, x, bias, *, n, res=0.01,
                      lo=float("-inf"), hi=float("inf"),
                      sharp_bounds=(1e-5, 2000.0)):
    """Pure-JAX reference mirroring the PyTorch module (correctness check)."""
    h = h + bias
    logit_pi, loc, log_s = h[..., :n], h[..., n:2 * n], h[..., 2 * n:]
    log_pi = logit_pi - jax.scipy.special.logsumexp(logit_pi, axis=-1, keepdims=True)
    loc = jnp.clip(loc, lo - 10 * res, hi + 10 * res)
    s = jnp.clip(jax.nn.softplus(log_s), *sharp_bounds)
    xc = jnp.clip(x, lo, hi)[..., None]
    xp, xm = xc + res / 2, xc - res / 2
    lo_cens = xc <= lo
    hi_cens = xc >= hi
    xm_ = jnp.where(lo_cens, -1.0, (xm - loc) * s)
    axm_ = jnp.where(lo_cens, 0.0, jnp.abs(xm_))
    xp_ = jnp.where(hi_cens, 1.0, (xp - loc) * s)
    axp_ = jnp.where(hi_cens, 0.0, jnp.abs(xp_))
    log_delta_cdf = (jnp.log(xp_ - xm_ + xp_ * axm_ - axp_ * xm_)
                     - jnp.log1p(axp_ + axm_ + axp_ * axm_) - math.log(2.0))
    log_prob = jax.scipy.special.logsumexp(log_pi + log_delta_cdf, axis=-1)
    pi = jnp.exp(log_pi)
    ent = -jnp.sum(jnp.where(pi > 0, pi * log_pi, 0.0), axis=-1)
    p_bar = pi.mean(axis=0)
    p_bar = p_bar / p_bar.sum()
    return {
        "log_prob": log_prob,
        "min_sharpness": s.min(), "max_sharpness": s.max(),
        "min_entropy": ent.min(), "max_entropy": ent.max(),
        "marginal_entropy": -jnp.sum(p_bar * jnp.log(p_bar)),
        "min_loc": loc.min(), "max_loc": loc.max(),
    }


if __name__ == "__main__":
    n = 16        # mixture components -> n_params = 48
    B = 300       # NOT a multiple of 128: exercises the partial edge tile + masking
    key = jax.random.PRNGKey(0)
    k1, k2 = jax.random.split(key)
    h = jax.random.normal(k1, (B, 3 * n), dtype=jnp.float32)
    x = jax.random.normal(k2, (B,), dtype=jnp.float32)

    # deterministic parameter init matching the module's __init__
    bias = jnp.concatenate([jnp.zeros((n,), jnp.float32),
                            jnp.logspace(-3, 1, n, dtype=jnp.float32),
                            jnp.zeros((n,), jnp.float32)])

    # default (unbounded) case: fast linear-space log_prob path, 2-tile grid
    out = jax.block_until_ready(censored_mixture_forward(h, x, bias, n=n))
    ref = reference_forward(h, x, bias, n=n)
    for k in out:
        assert jnp.allclose(out[k], ref[k], rtol=1e-5, atol=2e-5), k

    # censored case (finite lo/hi): exercises the censoring branches
    out_c = jax.block_until_ready(
        censored_mixture_forward(h, x, bias, n=n, lo=-1.0, hi=1.0))
    ref_c = reference_forward(h, x, bias, n=n, lo=-1.0, hi=1.0)
    for k in out_c:
        assert jnp.allclose(out_c[k], ref_c[k], rtol=1e-5, atol=2e-5), k

    print("KERNEL_OK")
</pallas_src>

<mosaic_0001>
module attributes {stable_mosaic.version = 11 : i64} {
  func.func @_cmpb_kernel(%arg0: i32, %arg1: memref<3x16x256xf32, #tpu.memory_space<vmem>>, %arg2: memref<1x256xf32, #tpu.memory_space<vmem>>, %arg3: memref<3x16x256xf32, #tpu.memory_space<vmem>>, %arg4: memref<1x256xf32, #tpu.memory_space<vmem>>, %arg5: memref<1x112x1xf32, #tpu.memory_space<vmem>>) attributes {dimension_semantics = [#tpu.dimension_semantics<parallel>], iteration_bounds = array<i64: 2>, scalar_prefetch = 0 : i64, scratch_operands = 0 : i64, tpu.core_type = #tpu.core_type<tc>, window_params = [{transform_indices = @transform_0, window_bounds = array<i64: 3, 16, 256>}, {transform_indices = @transform_1, window_bounds = array<i64: 1, 256>}, {pipeline_mode = #tpu.pipeline_mode<synchronous>, transform_indices = @transform_2, window_bounds = array<i64: 3, 16, 256>}, {transform_indices = @transform_3, window_bounds = array<i64: 1, 256>}, {transform_indices = @transform_4, window_bounds = array<i64: 1, 112, 1>}]} {
    %c0 = arith.constant 0 : index
    %c0_0 = arith.constant 0 : index
    %c0_1 = arith.constant 0 : index
    %0 = vector.load %arg1[%c0, %c0_0, %c0_1] : memref<3x16x256xf32, #tpu.memory_space<vmem>>, vector<1x16x256xf32>
    %1 = vector.shape_cast %0 : vector<1x16x256xf32> to vector<16x256xf32>
    %c0_2 = arith.constant 0 : index
    %c0_3 = arith.constant 0 : index
    %c0_4 = arith.constant 0 : index
    %2 = vector.load %arg3[%c0_2, %c0_3, %c0_4] : memref<3x16x256xf32, #tpu.memory_space<vmem>>, vector<1x16x256xf32>
    %3 = vector.shape_cast %2 : vector<1x16x256xf32> to vector<16x256xf32>
    %4 = arith.addf %1, %3 : vector<16x256xf32>
    %c1 = arith.constant 1 : index
    %c0_5 = arith.constant 0 : index
    %c0_6 = arith.constant 0 : index
    %5 = vector.load %arg1[%c1, %c0_5, %c0_6] : memref<3x16x256xf32, #tpu.memory_space<vmem>>, vector<1x16x256xf32>
    %6 = vector.shape_cast %5 : vector<1x16x256xf32> to vector<16x256xf32>
    %c1_7 = arith.constant 1 : index
    %c0_8 = arith.constant 0 : index
    %c0_9 = arith.constant 0 : index
    %7 = vector.load %arg3[%c1_7, %c0_8, %c0_9] : memref<3x16x256xf32, #tpu.memory_space<vmem>>, vector<1x16x256xf32>
    %8 = vector.shape_cast %7 : vector<1x16x256xf32> to vector<16x256xf32>
    %9 = arith.addf %6, %8 : vector<16x256xf32>
    %c2 = arith.constant 2 : index
    %c0_10 = arith.constant 0 : index
    %c0_11 = arith.constant 0 : index
    %10 = vector.load %arg1[%c2, %c0_10, %c0_11] : memref<3x16x256xf32, #tpu.memory_space<vmem>>, vector<1x16x256xf32>
    %11 = vector.shape_cast %10 : vector<1x16x256xf32> to vector<16x256xf32>
    %c2_12 = arith.constant 2 : index
    %c0_13 = arith.constant 0 : index
    %c0_14 = arith.constant 0 : index
    %12 = vector.load %arg3[%c2_12, %c0_13, %c0_14] : memref<3x16x256xf32, #tpu.memory_space<vmem>>, vector<1x16x256xf32>
    %13 = vector.shape_cast %12 : vector<1x16x256xf32> to vector<16x256xf32>
    %14 = arith.addf %11, %13 : vector<16x256xf32>
    %cst = arith.constant dense<0xFF800000> : vector<256xf32>
    %15 = vector.multi_reduction <maximumf>, %4, %cst [0] : vector<16x256xf32> to vector<256xf32>
    %16 = vector.shape_cast %15 : vector<256xf32> to vector<1x256xf32>
    %17 = vector.broadcast %16 : vector<1x256xf32> to vector<16x256xf32>
    %18 = arith.subf %4, %17 : vector<16x256xf32>
    %19 = math.exp %18 : vector<16x256xf32>
    %cst_15 = arith.constant dense<0.000000e+00> : vector<256xf32>
    %20 = vector.multi_reduction <add>, %19, %cst_15 [0] : vector<16x256xf32> to vector<256xf32>
    %21 = vector.shape_cast %20 : vector<256xf32> to vector<1x256xf32>
    %22 = math.log %21 : vector<1x256xf32>
    %cst_16 = arith.constant 1.000000e+00 : f32
    %23 = vector.broadcast %cst_16 : f32 to vector<1x256xf32>
    %24 = arith.divf %23, %21 : vector<1x256xf32>
    %25 = vector.broadcast %24 : vector<1x256xf32> to vector<16x256xf32>
    %26 = arith.mulf %19, %25 : vector<16x256xf32>
    %27 = vector.broadcast %16 : vector<1x256xf32> to vector<16x256xf32>
    %28 = arith.subf %4, %27 : vector<16x256xf32>
    %29 = vector.broadcast %22 : vector<1x256xf32> to vector<16x256xf32>
    %30 = arith.subf %28, %29 : vector<16x256xf32>
    %cst_17 = arith.constant 0.000000e+00 : f32
    %31 = vector.broadcast %cst_17 : f32 to vector<16x256xf32>
    %32 = arith.maximumf %14, %31 : vector<16x256xf32>
    %33 = math.absf %14 : vector<16x256xf32>
    %cst_18 = arith.constant 0.000000e+00 : f32
    %34 = vector.broadcast %cst_18 : f32 to vector<16x256xf32>
    %35 = arith.subf %34, %33 : vector<16x256xf32>
    %36 = math.exp %35 : vector<16x256xf32>
    %37 = math.log1p %36 : vector<16x256xf32>
    %38 = arith.addf %32, %37 : vector<16x256xf32>
    %cst_19 = arith.constant 9.99999974E-6 : f32
    %cst_20 = arith.constant 2.000000e+03 : f32
    %39 = vector.broadcast %cst_19 : f32 to vector<16x256xf32>
    %40 = arith.maximumf %39, %38 : vector<16x256xf32>
    %41 = vector.broadcast %cst_20 : f32 to vector<16x256xf32>
    %42 = arith.minimumf %41, %40 : vector<16x256xf32>
    %c0_21 = arith.constant 0 : index
    %c0_22 = arith.constant 0 : index
    %43 = vector.load %arg2[%c0_21, %c0_22] : memref<1x256xf32, #tpu.memory_space<vmem>>, vector<1x256xf32>
    %cst_23 = arith.constant 5.000000e-03 : f32
    %44 = vector.broadcast %cst_23 : f32 to vector<1x256xf32>
    %45 = arith.addf %43, %44 : vector<1x256xf32>
    %cst_24 = arith.constant 5.000000e-03 : f32
    %46 = vector.broadcast %cst_24 : f32 to vector<1x256xf32>
    %47 = arith.subf %43, %46 : vector<1x256xf32>
    %48 = vector.broadcast %47 : vector<1x256xf32> to vector<16x256xf32>
    %49 = arith.subf %48, %9 : vector<16x256xf32>
    %50 = arith.mulf %49, %42 : vector<16x256xf32>
    %51 = vector.broadcast %45 : vector<1x256xf32> to vector<16x256xf32>
    %52 = arith.subf %51, %9 : vector<16x256xf32>
    %53 = arith.mulf %52, %42 : vector<16x256xf32>
    %54 = math.absf %50 : vector<16x256xf32>
    %55 = math.absf %53 : vector<16x256xf32>
    %56 = arith.subf %53, %50 : vector<16x256xf32>
    %57 = arith.mulf %53, %54 : vector<16x256xf32>
    %58 = arith.addf %56, %57 : vector<16x256xf32>
    %59 = arith.mulf %55, %50 : vector<16x256xf32>
    %60 = arith.subf %58, %59 : vector<16x256xf32>
    %61 = arith.addf %55, %54 : vector<16x256xf32>
    %62 = arith.mulf %55, %54 : vector<16x256xf32>
    %63 = arith.addf %61, %62 : vector<16x256xf32>
    %cst_25 = arith.constant 1.000000e+00 : f32
    %64 = vector.broadcast %cst_25 : f32 to vector<16x256xf32>
    %65 = arith.addf %64, %63 : vector<16x256xf32>
    %66 = arith.divf %60, %65 : vector<16x256xf32>
    %67 = arith.mulf %19, %66 : vector<16x256xf32>
    %cst_26 = arith.constant dense<0.000000e+00> : vector<256xf32>
    %68 = vector.multi_reduction <add>, %67, %cst_26 [0] : vector<16x256xf32> to vector<256xf32>
    %69 = vector.shape_cast %68 : vector<256xf32> to vector<1x256xf32>
    %70 = math.log %69 : vector<1x256xf32>
    %71 = arith.subf %70, %22 : vector<1x256xf32>
    %cst_27 = arith.constant 0.693147182 : f32
    %72 = vector.broadcast %cst_27 : f32 to vector<1x256xf32>
    %73 = arith.subf %71, %72 : vector<1x256xf32>
    %c0_28 = arith.constant 0 : index
    %c0_29 = arith.constant 0 : index
    %74 = vector.load %arg4[%c0_28, %c0_29] : memref<1x256xf32, #tpu.memory_space<vmem>>, vector<1x256xf32>
    tpu.vector_store %arg4[%c0_28, %c0_29], %73 {strides = array<i32>} : memref<1x256xf32, #tpu.memory_space<vmem>>, vector<1x256xf32>,
    %cst_30 = arith.constant 0.000000e+00 : f32
    %75 = vector.broadcast %cst_30 : f32 to vector<16x256xf32>
    %76 = arith.cmpf ogt, %26, %75 : vector<16x256xf32>
    %77 = arith.mulf %26, %30 : vector<16x256xf32>
    %cst_31 = arith.constant 0.000000e+00 : f32
    %78 = vector.broadcast %cst_31 : f32 to vector<16x256xf32>
    %79 = arith.select %76, %77, %78 : vector<16x256xi1>, vector<16x256xf32>
    %cst_32 = arith.constant dense<0.000000e+00> : vector<256xf32>
    %80 = vector.multi_reduction <add>, %79, %cst_32 [0] : vector<16x256xf32> to vector<256xf32>
    %81 = vector.shape_cast %80 : vector<256xf32> to vector<1x256xf32>
    %cst_33 = arith.constant 0.000000e+00 : f32
    %82 = vector.broadcast %cst_33 : f32 to vector<1x256xf32>
    %83 = arith.subf %82, %81 : vector<1x256xf32>
    %c1_i32 = arith.constant 1 : i32
    %84 = arith.cmpi eq, %arg0, %c1_i32 : i32
    %true = arith.constant true
    %85 = arith.xori %84, %true : i1
    %86 = arith.extui %85 : i1 to i32
    %c0_i32 = arith.constant 0 : i32
    %87 = arith.cmpi ne, %86, %c0_i32 : i32
    scf.if %87 {
      %cst_35 = arith.constant dense<0.000000e+00> : vector<16xf32>
      %90 = vector.multi_reduction <add>, %26, %cst_35 [1] : vector<16x256xf32> to vector<16xf32>
      %91 = vector.shape_cast %90 : vector<16xf32> to vector<16x1xf32>
      %c0_36 = arith.constant 0 : index
      %c0_37 = arith.constant 0 : index
      %c0_38 = arith.constant 0 : index
      %92 = vector.load %arg5[%c0_36, %c0_37, %c0_38] : memref<1x112x1xf32, #tpu.memory_space<vmem>>, vector<1x16x1xf32>
      %93 = vector.shape_cast %92 : vector<1x16x1xf32> to vector<16x1xf32>
      %94 = vector.shape_cast %91 : vector<16x1xf32> to vector<1x16x1xf32>
      tpu.vector_store %arg5[%c0_36, %c0_37, %c0_38], %94 {strides = array<i32>} : memref<1x112x1xf32, #tpu.memory_space<vmem>>, vector<1x16x1xf32>,
      %cst_39 = arith.constant dense<0x7F800000> : vector<16xf32>
      %95 = vector.multi_reduction <minimumf>, %42, %cst_39 [1] : vector<16x256xf32> to vector<16xf32>
      %96 = vector.shape_cast %95 : vector<16xf32> to vector<16x1xf32>
      %c0_40 = arith.constant 0 : index
      %c16 = arith.constant 16 : index
      %c0_41 = arith.constant 0 : index
      %97 = vector.load %arg5[%c0_40, %c16, %c0_41] : memref<1x112x1xf32, #tpu.memory_space<vmem>>, vector<1x16x1xf32>
      %98 = vector.shape_cast %97 : vector<1x16x1xf32> to vector<16x1xf32>
      %99 = vector.shape_cast %96 : vector<16x1xf32> to vector<1x16x1xf32>
      tpu.vector_store %arg5[%c0_40, %c16, %c0_41], %99 {strides = array<i32>} : memref<1x112x1xf32, #tpu.memory_space<vmem>>, vector<1x16x1xf32>,
      %cst_42 = arith.constant dense<0xFF800000> : vector<16xf32>
      %100 = vector.multi_reduction <maximumf>, %42, %cst_42 [1] : vector<16x256xf32> to vector<16xf32>
      %101 = vector.shape_cast %100 : vector<16xf32> to vector<16x1xf32>
      %c0_43 = arith.constant 0 : index
      %c32 = arith.constant 32 : index
      %c0_44 = arith.constant 0 : index
      %102 = vector.load %arg5[%c0_43, %c32, %c0_44] : memref<1x112x1xf32, #tpu.memory_space<vmem>>, vector<1x16x1xf32>
      %103 = vector.shape_cast %102 : vector<1x16x1xf32> to vector<16x1xf32>
      %104 = vector.shape_cast %101 : vector<16x1xf32> to vector<1x16x1xf32>
      tpu.vector_store %arg5[%c0_43, %c32, %c0_44], %104 {strides = array<i32>} : memref<1x112x1xf32, #tpu.memory_space<vmem>>, vector<1x16x1xf32>,
      %cst_45 = arith.constant dense<0x7F800000> : vector<16xf32>
      %105 = vector.multi_reduction <minimumf>, %9, %cst_45 [1] : vector<16x256xf32> to vector<16xf32>
      %106 = vector.shape_cast %105 : vector<16xf32> to vector<16x1xf32>
      %c0_46 = arith.constant 0 : index
      %c48 = arith.constant 48 : index
      %c0_47 = arith.constant 0 : index
      %107 = vector.load %arg5[%c0_46, %c48, %c0_47] : memref<1x112x1xf32, #tpu.memory_space<vmem>>, vector<1x16x1xf32>
      %108 = vector.shape_cast %107 : vector<1x16x1xf32> to vector<16x1xf32>
      %109 = vector.shape_cast %106 : vector<16x1xf32> to vector<1x16x1xf32>
      tpu.vector_store %arg5[%c0_46, %c48, %c0_47], %109 {strides = array<i32>} : memref<1x112x1xf32, #tpu.memory_space<vmem>>, vector<1x16x1xf32>,
      %cst_48 = arith.constant dense<0xFF800000> : vector<16xf32>
      %110 = vector.multi_reduction <maximumf>, %9, %cst_48 [1] : vector<16x256xf32> to vector<16xf32>
      %111 = vector.shape_cast %110 : vector<16xf32> to vector<16x1xf32>
      %c0_49 = arith.constant 0 : index
      %c64 = arith.constant 64 : index
      %c0_50 = arith.constant 0 : index
      %112 = vector.load %arg5[%c0_49, %c64, %c0_50] : memref<1x112x1xf32, #tpu.memory_space<vmem>>, vector<1x16x1xf32>
      %113 = vector.shape_cast %112 : vector<1x16x1xf32> to vector<16x1xf32>
      %114 = vector.shape_cast %111 : vector<16x1xf32> to vector<1x16x1xf32>
      tpu.vector_store %arg5[%c0_49, %c64, %c0_50], %114 {strides = array<i32>} : memref<1x112x1xf32, #tpu.memory_space<vmem>>, vector<1x16x1xf32>,
      %cst_51 = arith.constant dense<0x7F800000> : vector<1xf32>
      %115 = vector.multi_reduction <minimumf>, %83, %cst_51 [1] : vector<1x256xf32> to vector<1xf32>
      %116 = vector.shape_cast %115 : vector<1xf32> to vector<1x1xf32>
      %117 = vector.shape_cast %116 : vector<1x1xf32> to vector<1x1xf32>
      %118 = vector.broadcast %117 : vector<1x1xf32> to vector<16x1xf32>
      %c0_52 = arith.constant 0 : index
      %c80 = arith.constant 80 : index
      %c0_53 = arith.constant 0 : index
      %119 = vector.load %arg5[%c0_52, %c80, %c0_53] : memref<1x112x1xf32, #tpu.memory_space<vmem>>, vector<1x16x1xf32>
      %120 = vector.shape_cast %119 : vector<1x16x1xf32> to vector<16x1xf32>
      %121 = vector.shape_cast %118 : vector<16x1xf32> to vector<1x16x1xf32>
      tpu.vector_store %arg5[%c0_52, %c80, %c0_53], %121 {strides = array<i32>} : memref<1x112x1xf32, #tpu.memory_space<vmem>>, vector<1x16x1xf32>,
      %cst_54 = arith.constant dense<0xFF800000> : vector<1xf32>
      %122 = vector.multi_reduction <maximumf>, %83, %cst_54 [1] : vector<1x256xf32> to vector<1xf32>
      %123 = vector.shape_cast %122 : vector<1xf32> to vector<1x1xf32>
      %124 = vector.shape_cast %123 : vector<1x1xf32> to vector<1x1xf32>
      %125 = vector.broadcast %124 : vector<1x1xf32> to vector<16x1xf32>
      %c0_55 = arith.constant 0 : index
      %c96 = arith.constant 96 : index
      %c0_56 = arith.constant 0 : index
      %126 = vector.load %arg5[%c0_55, %c96, %c0_56] : memref<1x112x1xf32, #tpu.memory_space<vmem>>, vector<1x16x1xf32>
      %127 = vector.shape_cast %126 : vector<1x16x1xf32> to vector<16x1xf32>
      %128 = vector.shape_cast %125 : vector<16x1xf32> to vector<1x16x1xf32>
      tpu.vector_store %arg5[%c0_55, %c96, %c0_56], %128 {strides = array<i32>} : memref<1x112x1xf32, #tpu.memory_space<vmem>>, vector<1x16x1xf32>,
    } else {
    }
    %88 = arith.extui %84 : i1 to i32
    %c0_i32_34 = arith.constant 0 : i32
    %89 = arith.cmpi ne, %88, %c0_i32_34 : i32
    scf.if %89 {
      %90 = tpu.iota {dimensions = array<i32: 1>} : vector<1x256xi32>
      %c44_i32 = arith.constant 44 : i32
      %91 = vector.broadcast %c44_i32 : i32 to vector<1x256xi32>
      %92 = arith.cmpi slt, %90, %91 : vector<1x256xi32>
      %cst_35 = arith.constant 0.000000e+00 : f32
      %93 = vector.shape_cast %92 : vector<1x256xi1> to vector<1x256xi1>
      %94 = vector.broadcast %93 : vector<1x256xi1> to vector<16x256xi1>
      %95 = vector.broadcast %cst_35 : f32 to vector<16x256xf32>
      %96 = arith.select %94, %26, %95 : vector<16x256xi1>, vector<16x256xf32>
      %cst_36 = arith.constant 0x7F800000 : f32
      %97 = vector.shape_cast %92 : vector<1x256xi1> to vector<1x256xi1>
      %98 = vector.broadcast %97 : vector<1x256xi1> to vector<16x256xi1>
      %99 = vector.broadcast %cst_36 : f32 to vector<16x256xf32>
      %100 = arith.select %98, %42, %99 : vector<16x256xi1>, vector<16x256xf32>
      %cst_37 = arith.constant 0xFF800000 : f32
      %101 = vector.shape_cast %92 : vector<1x256xi1> to vector<1x256xi1>
      %102 = vector.broadcast %101 : vector<1x256xi1> to vector<16x256xi1>
      %103 = vector.broadcast %cst_37 : f32 to vector<16x256xf32>
      %104 = arith.select %102, %42, %103 : vector<16x256xi1>, vector<16x256xf32>
      %cst_38 = arith.constant 0x7F800000 : f32
      %105 = vector.shape_cast %92 : vector<1x256xi1> to vector<1x256xi1>
      %106 = vector.broadcast %105 : vector<1x256xi1> to vector<16x256xi1>
      %107 = vector.broadcast %cst_38 : f32 to vector<16x256xf32>
      %108 = arith.select %106, %9, %107 : vector<16x256xi1>, vector<16x256xf32>
      %cst_39 = arith.constant 0xFF800000 : f32
      %109 = vector.shape_cast %92 : vector<1x256xi1> to vector<1x256xi1>
      %110 = vector.broadcast %109 : vector<1x256xi1> to vector<16x256xi1>
      %111 = vector.broadcast %cst_39 : f32 to vector<16x256xf32>
      %112 = arith.select %110, %9, %111 : vector<16x256xi1>, vector<16x256xf32>
      %cst_40 = arith.constant 0x7F800000 : f32
      %113 = vector.broadcast %cst_40 : f32 to vector<1x256xf32>
      %114 = arith.select %92, %83, %113 : vector<1x256xi1>, vector<1x256xf32>
      %cst_41 = arith.constant 0xFF800000 : f32
      %115 = vector.broadcast %cst_41 : f32 to vector<1x256xf32>
      %116 = arith.select %92, %83, %115 : vector<1x256xi1>, vector<1x256xf32>
      %cst_42 = arith.constant dense<0.000000e+00> : vector<16xf32>
      %117 = vector.multi_reduction <add>, %96, %cst_42 [1] : vector<16x256xf32> to vector<16xf32>
      %118 = vector.shape_cast %117 : vector<16xf32> to vector<16x1xf32>
      %c0_43 = arith.constant 0 : index
      %c0_44 = arith.constant 0 : index
      %c0_45 = arith.constant 0 : index
      %119 = vector.load %arg5[%c0_43, %c0_44, %c0_45] : memref<1x112x1xf32, #tpu.memory_space<vmem>>, vector<1x16x1xf32>
      %120 = vector.shape_cast %119 : vector<1x16x1xf32> to vector<16x1xf32>
      %121 = vector.shape_cast %118 : vector<16x1xf32> to vector<1x16x1xf32>
      tpu.vector_store %arg5[%c0_43, %c0_44, %c0_45], %121 {strides = array<i32>} : memref<1x112x1xf32, #tpu.memory_space<vmem>>, vector<1x16x1xf32>,
      %cst_46 = arith.constant dense<0x7F800000> : vector<16xf32>
      %122 = vector.multi_reduction <minimumf>, %100, %cst_46 [1] : vector<16x256xf32> to vector<16xf32>
      %123 = vector.shape_cast %122 : vector<16xf32> to vector<16x1xf32>
      %c0_47 = arith.constant 0 : index
      %c16 = arith.constant 16 : index
      %c0_48 = arith.constant 0 : index
      %124 = vector.load %arg5[%c0_47, %c16, %c0_48] : memref<1x112x1xf32, #tpu.memory_space<vmem>>, vector<1x16x1xf32>
      %125 = vector.shape_cast %124 : vector<1x16x1xf32> to vector<16x1xf32>
      %126 = vector.shape_cast %123 : vector<16x1xf32> to vector<1x16x1xf32>
      tpu.vector_store %arg5[%c0_47, %c16, %c0_48], %126 {strides = array<i32>} : memref<1x112x1xf32, #tpu.memory_space<vmem>>, vector<1x16x1xf32>,
      %cst_49 = arith.constant dense<0xFF800000> : vector<16xf32>
      %127 = vector.multi_reduction <maximumf>, %104, %cst_49 [1] : vector<16x256xf32> to vector<16xf32>
      %128 = vector.shape_cast %127 : vector<16xf32> to vector<16x1xf32>
      %c0_50 = arith.constant 0 : index
      %c32 = arith.constant 32 : index
      %c0_51 = arith.constant 0 : index
      %129 = vector.load %arg5[%c0_50, %c32, %c0_51] : memref<1x112x1xf32, #tpu.memory_space<vmem>>, vector<1x16x1xf32>
      %130 = vector.shape_cast %129 : vector<1x16x1xf32> to vector<16x1xf32>
      %131 = vector.shape_cast %128 : vector<16x1xf32> to vector<1x16x1xf32>
      tpu.vector_store %arg5[%c0_50, %c32, %c0_51], %131 {strides = array<i32>} : memref<1x112x1xf32, #tpu.memory_space<vmem>>, vector<1x16x1xf32>,
      %cst_52 = arith.constant dense<0x7F800000> : vector<16xf32>
      %132 = vector.multi_reduction <minimumf>, %108, %cst_52 [1] : vector<16x256xf32> to vector<16xf32>
      %133 = vector.shape_cast %132 : vector<16xf32> to vector<16x1xf32>
      %c0_53 = arith.constant 0 : index
      %c48 = arith.constant 48 : index
      %c0_54 = arith.constant 0 : index
      %134 = vector.load %arg5[%c0_53, %c48, %c0_54] : memref<1x112x1xf32, #tpu.memory_space<vmem>>, vector<1x16x1xf32>
      %135 = vector.shape_cast %134 : vector<1x16x1xf32> to vector<16x1xf32>
      %136 = vector.shape_cast %133 : vector<16x1xf32> to vector<1x16x1xf32>
      tpu.vector_store %arg5[%c0_53, %c48, %c0_54], %136 {strides = array<i32>} : memref<1x112x1xf32, #tpu.memory_space<vmem>>, vector<1x16x1xf32>,
      %cst_55 = arith.constant dense<0xFF800000> : vector<16xf32>
      %137 = vector.multi_reduction <maximumf>, %112, %cst_55 [1] : vector<16x256xf32> to vector<16xf32>
      %138 = vector.shape_cast %137 : vector<16xf32> to vector<16x1xf32>
      %c0_56 = arith.constant 0 : index
      %c64 = arith.constant 64 : index
      %c0_57 = arith.constant 0 : index
      %139 = vector.load %arg5[%c0_56, %c64, %c0_57] : memref<1x112x1xf32, #tpu.memory_space<vmem>>, vector<1x16x1xf32>
      %140 = vector.shape_cast %139 : vector<1x16x1xf32> to vector<16x1xf32>
      %141 = vector.shape_cast %138 : vector<16x1xf32> to vector<1x16x1xf32>
      tpu.vector_store %arg5[%c0_56, %c64, %c0_57], %141 {strides = array<i32>} : memref<1x112x1xf32, #tpu.memory_space<vmem>>, vector<1x16x1xf32>,
      %cst_58 = arith.constant dense<0x7F800000> : vector<1xf32>
      %142 = vector.multi_reduction <minimumf>, %114, %cst_58 [1] : vector<1x256xf32> to vector<1xf32>
      %143 = vector.shape_cast %142 : vector<1xf32> to vector<1x1xf32>
      %144 = vector.shape_cast %143 : vector<1x1xf32> to vector<1x1xf32>
      %145 = vector.broadcast %144 : vector<1x1xf32> to vector<16x1xf32>
      %c0_59 = arith.constant 0 : index
      %c80 = arith.constant 80 : index
      %c0_60 = arith.constant 0 : index
      %146 = vector.load %arg5[%c0_59, %c80, %c0_60] : memref<1x112x1xf32, #tpu.memory_space<vmem>>, vector<1x16x1xf32>
      %147 = vector.shape_cast %146 : vector<1x16x1xf32> to vector<16x1xf32>
      %148 = vector.shape_cast %145 : vector<16x1xf32> to vector<1x16x1xf32>
      tpu.vector_store %arg5[%c0_59, %c80, %c0_60], %148 {strides = array<i32>} : memref<1x112x1xf32, #tpu.memory_space<vmem>>, vector<1x16x1xf32>,
      %cst_61 = arith.constant dense<0xFF800000> : vector<1xf32>
      %149 = vector.multi_reduction <maximumf>, %116, %cst_61 [1] : vector<1x256xf32> to vector<1xf32>
      %150 = vector.shape_cast %149 : vector<1xf32> to vector<1x1xf32>
      %151 = vector.shape_cast %150 : vector<1x1xf32> to vector<1x1xf32>
      %152 = vector.broadcast %151 : vector<1x1xf32> to vector<16x1xf32>
      %c0_62 = arith.constant 0 : index
      %c96 = arith.constant 96 : index
      %c0_63 = arith.constant 0 : index
      %153 = vector.load %arg5[%c0_62, %c96, %c0_63] : memref<1x112x1xf32, #tpu.memory_space<vmem>>, vector<1x16x1xf32>
      %154 = vector.shape_cast %153 : vector<1x16x1xf32> to vector<16x1xf32>
      %155 = vector.shape_cast %152 : vector<16x1xf32> to vector<1x16x1xf32>
      tpu.vector_store %arg5[%c0_62, %c96, %c0_63], %155 {strides = array<i32>} : memref<1x112x1xf32, #tpu.memory_space<vmem>>, vector<1x16x1xf32>,
    } else {
    }
    return
  }
  func.func @transform_0(%arg0: i32) -> (i32, i32, i32) {
    %c0_i32 = arith.constant 0 : i32
    %c0_i32_0 = arith.constant 0 : i32
    %c0_i32_1 = arith.constant 0 : i32
    return %c0_i32, %c0_i32_0, %arg0 : i32, i32, i32
  }
  func.func @transform_1(%arg0: i32) -> (i32, i32) {
    %c0_i32 = arith.constant 0 : i32
    %c0_i32_0 = arith.constant 0 : i32
    return %c0_i32, %arg0 : i32, i32
  }
  func.func @transform_2(%arg0: i32) -> (i32, i32, i32) {
    %c0_i32 = arith.constant 0 : i32
    %c0_i32_0 = arith.constant 0 : i32
    %c0_i32_1 = arith.constant 0 : i32
    %c0_i32_2 = arith.constant 0 : i32
    return %c0_i32, %c0_i32_0, %c0_i32_1 : i32, i32, i32
  }
  func.func @transform_3(%arg0: i32) -> (i32, i32) {
    %c0_i32 = arith.constant 0 : i32
    %c0_i32_0 = arith.constant 0 : i32
    return %c0_i32, %arg0 : i32, i32
  }
  func.func @transform_4(%arg0: i32) -> (i32, i32, i32) {
    %c0_i32 = arith.constant 0 : i32
    %c0_i32_0 = arith.constant 0 : i32
    %c0_i32_1 = arith.constant 0 : i32
    return %arg0, %c0_i32, %c0_i32_0 : i32, i32, i32
  }
}

</mosaic_0001>

<llo_original>
// kernel: tpu_custom_call.1
$region0: #{tpu_custom_call.1}
  #allocation0 [shape = 'u32[]', space=smem, size = 0x4, offset = 0x4, fixed_abs, tag = 'smem constant byte address 0x4 - core index']
  #allocation1 [shape = 'u32[144,128]{1,0:T(1,128)}', space=vmem, size = 0x12000, scoped, tag = 'internal scratch']
  %s0 = inlined_call_operand.hbm [shape: f32[3,16,300], index: 0, kind: input, shape index: {}]
  %s1 = inlined_call_operand.vmem [shape: f32[1,300], index: 1, kind: input, shape index: {}]
  %s2 = inlined_call_operand.hbm [shape: f32[3,16,256], index: 2, kind: input, shape index: {}]
  %s3 = inlined_call_operand.hbm [shape: f32[1,300], index: 3, kind: output, shape index: {0}]
  %s4 = inlined_call_operand.vmem [shape: f32[2,112,1], index: 4, kind: output, shape index: {1}]
  %5 = xla_tuple %s3, %s4
  %s6 = sld [smem:[#allocation0]]
  $region69: #{tpu_custom_call.1} parent=0
    _
  %s8 = ssub.s32 1, %s6
  %s9 = scalar_select 0, %s8, %s6
  $region1: #{tpu_custom_call.1} parent=0
    #allocation2 [shape = 'u8[98304]{0}', space=vmem, size = 0x18000, scoped, tag = 'input window, operand 0']
    #allocation3 [shape = 's32[2]{0}', space=sflag, size = 0x8, scoped, tag = 'scoped memory for tpu_custom_call.1']
    #allocation4 [shape = 's32[2]{0}', space=sflag, size = 0x8, scoped, tag = 'scoped memory for tpu_custom_call.1']
    #allocation5 [shape = 'u8[49152]{0}', space=vmem, size = 0xc000, scoped, tag = 'input window, operand 2, single buffered']
    #allocation6 [shape = 's32[1]{0}', space=sflag, size = 0x4, scoped, tag = 'scoped memory for tpu_custom_call.1']
    #allocation7 [shape = 'u8[2048]{0}', space=vmem, size = 0x800, scoped, tag = 'output window, operand 0']
    %10 = vsyncpa [#allocation3], 0
    %s11 = scalar_lea.sflag [#allocation3], 1
    %12 = vsyncpa %s11, 0
    %13 = vsyncpa [#allocation6], 0
    %14 = vsyncpa [#allocation4], 0
    %s15 = scalar_lea.sflag [#allocation4], 1
    %16 = vsyncpa %s15, 0
    loop: start=0, step=1, limit=4
    $region2: #{tpu_custom_call.1} parent=1 // loop_pre_header
      _
    $region3: #{tpu_custom_call.1} parent=1 // loop_header
      %s18 = sphi 0, %s22
      %p19 = scmp.ge.s32.totalorder %s18, 4
      %s28 = sphi 0, %s30
      %s31 = sphi 0, %s28
      %s32 = sphi 0, %s31
      %s48 = sphi 0, %s32
      %s54 = sphi 0, %s56
      %s57 = sphi 0, %s54
      %s58 = sphi 0, %s57
      %s74 = sphi 0, %s58
      %s78 = sphi 0, %s78
      %s80 = sphi 0, %s78
      %s81 = sphi 0, %s80
      %s95 = sphi 0, %s81
      %s101 = sphi 0, %s103
      %s104 = sphi 0, %s101
      %s105 = sphi 0, %s104
      %s121 = sphi 0, %s105
      %s127 = sphi 0, %s129
      %s130 = sphi 0, %s127
      %s131 = sphi 0, %s130
      %s147 = sphi 0, %s131
    $region4: #{tpu_custom_call.1} parent=1 // loop_header_branch
      %21 = sbr.rel (%p19) target = $region8
    $region5: #{tpu_custom_call.1} parent=1 // loop_body
      %s23 = ssub.s32 %s18, 1
      %s24 = ssub.s32 %s18, 2
      %s25 = sadd.s32 %s18, 1
      %s26 = ssub.s32 %s18, %s25
      %p27 = scmp.eq.s32.totalorder %s26, 0
      %s29 = sadd.s32 %s28, 1
      %s30 = scalar_select %p27, %s28, %s29
      %p33 = pneg %p27
      %p34 = scmp.eq.s32.totalorder %s18, 1
      %p35 = por %p33, %p34
      %p36 = scmp.ne.s32.totalorder %s28, %s31
      %p37 = scmp.eq.s32.totalorder %s18, 0
      %p38 = por %p36, %p37
      %p39 = scmp.ne.s32.totalorder %s28, %s31
      %p40 = scmp.eq.s32.totalorder %s23, 1
      %p41 = por %p39, %p40
      %p42 = scmp.ne.s32.totalorder %s31, %s32
      %p43 = scmp.eq.s32.totalorder %s23, 0
      %p44 = por %p42, %p43
      %p45 = scmp.ne.s32.totalorder %s31, %s32
      %p46 = scmp.eq.s32.totalorder %s24, 1
      %p47 = por %p45, %p46
      %p49 = scmp.ne.s32.totalorder %s32, %s48
      %p50 = scmp.eq.s32.totalorder %s24, 0
      %p51 = por %p49, %p50
      %s52 = ssub.s32 %s18, %s25
      %p53 = scmp.eq.s32.totalorder %s52, 0
      %s55 = sadd.s32 %s54, 1
      %s56 = scalar_select %p53, %s54, %s55
      %p59 = pneg %p53
      %p60 = scmp.eq.s32.totalorder %s18, 1
      %p61 = por %p59, %p60
      %p62 = scmp.ne.s32.totalorder %s54, %s57
      %p63 = scmp.eq.s32.totalorder %s18, 0
      %p64 = por %p62, %p63
      %p65 = scmp.ne.s32.totalorder %s54, %s57
      %p66 = scmp.eq.s32.totalorder %s23, 1
      %p67 = por %p65, %p66
      %p68 = scmp.ne.s32.totalorder %s57, %s58
      %p69 = scmp.eq.s32.totalorder %s23, 0
      %p70 = por %p68, %p69
      %p71 = scmp.ne.s32.totalorder %s57, %s58
      %p72 = scmp.eq.s32.totalorder %s24, 1
      %p73 = por %p71, %p72
      %p75 = scmp.ne.s32.totalorder %s58, %s74
      %p76 = scmp.eq.s32.totalorder %s24, 0
      %p77 = por %p75, %p76
      %s79 = sadd.s32 %s78, 1
      %p82 = scmp.eq.s32.totalorder %s18, 1
      %p83 = scmp.ne.s32.totalorder %s78, %s80
      %p84 = scmp.eq.s32.totalorder %s18, 0
      %p85 = por %p83, %p84
      %p86 = scmp.ne.s32.totalorder %s78, %s80
      %p87 = scmp.eq.s32.totalorder %s23, 1
      %p88 = por %p86, %p87
      %p89 = scmp.ne.s32.totalorder %s80, %s81
      %p90 = scmp.eq.s32.totalorder %s23, 0
      %p91 = por %p89, %p90
      %p92 = scmp.ne.s32.totalorder %s80, %s81
      %p93 = scmp.eq.s32.totalorder %s24, 1
      %p94 = por %p92, %p93
      %p96 = scmp.ne.s32.totalorder %s81, %s95
      %p97 = scmp.eq.s32.totalorder %s24, 0
      %p98 = por %p96, %p97
      %s99 = ssub.s32 %s18, %s25
      %p100 = scmp.eq.s32.totalorder %s99, 0
      %s102 = sadd.s32 %s101, 1
      %s103 = scalar_select %p100, %s101, %s102
      %p106 = pneg %p100
      %p107 = scmp.eq.s32.totalorder %s18, 1
      %p108 = por %p106, %p107
      %p109 = scmp.ne.s32.totalorder %s101, %s104
      %p110 = scmp.eq.s32.totalorder %s18, 0
      %p111 = por %p109, %p110
      %p112 = scmp.ne.s32.totalorder %s101, %s104
      %p113 = scmp.eq.s32.totalorder %s23, 1
      %p114 = por %p112, %p113
      %p115 = scmp.ne.s32.totalorder %s104, %s105
      %p116 = scmp.eq.s32.totalorder %s23, 0
      %p117 = por %p115, %p116
      %p118 = scmp.ne.s32.totalorder %s104, %s105
      %p119 = scmp.eq.s32.totalorder %s24, 1
      %p120 = por %p118, %p119
      %p122 = scmp.ne.s32.totalorder %s105, %s121
      %p123 = scmp.eq.s32.totalorder %s24, 0
      %p124 = por %p122, %p123
      %s125 = ssub.s32 %s18, %s25
      %p126 = scmp.eq.s32.totalorder %s125, 0
      %s128 = sadd.s32 %s127, 1
      %s129 = scalar_select %p126, %s127, %s128
      %p132 = pneg %p126
      %p133 = scmp.eq.s32.totalorder %s18, 1
      %p134 = por %p132, %p133
      %p135 = scmp.ne.s32.totalorder %s127, %s130
      %p136 = scmp.eq.s32.totalorder %s18, 0
      %p137 = por %p135, %p136
      %p138 = scmp.ne.s32.totalorder %s127, %s130
      %p139 = scmp.eq.s32.totalorder %s23, 1
      %p140 = por %p138, %p139
      %p141 = scmp.ne.s32.totalorder %s130, %s131
      %p142 = scmp.eq.s32.totalorder %s23, 0
      %p143 = por %p141, %p142
      %p144 = scmp.ne.s32.totalorder %s130, %s131
      %p145 = scmp.eq.s32.totalorder %s24, 1
      %p146 = por %p144, %p145
      %p148 = scmp.ne.s32.totalorder %s131, %s147
      %p149 = scmp.eq.s32.totalorder %s24, 0
      %p150 = por %p148, %p149
      %p151 = scmp.le.s32.totalorder 1, %s18
      %p152 = scmp.lt.s32.totalorder %s18, 3
      %p153 = pnand %p151, %p152
      %p154 = pneg %p153
      // Predicated region
      $region9: #{tpu_custom_call.1} parent=5 // pred_check
        _
      $region10: #{tpu_custom_call.1} parent=5 // pred_check_branch
        %156 = sbr.rel (%p153) target = $region12
      $region11: #{tpu_custom_call.1} parent=5 // pred_region
        %s157 = ssub.s32 %s18, 1
        // Predicated region
        $region13: #{tpu_custom_call.1} parent=11 // pred_check
          %p158 = pneg %p91
        $region14: #{tpu_custom_call.1} parent=11 // pred_check_branch
          %160 = sbr.rel (%p158) target = $region16
        $region15: #{tpu_custom_call.1} parent=11 // pred_region
          %s162 = ssub.s32 1536, 1536
          %163 = vsyncadd [#allocation6], %s162
          %s164 = sshll.u32 [#allocation5], 4
          %s165 = int_to_ptr.vmem [resolvable:$true] %s164
          %170 = dma.hbm_to_vmem [thread:$0]  %s2, 1536, %s165, [#allocation6], 256, 256, 16
        $region16: #{tpu_custom_call.1} parent=11 // pred_fallthru
          _
      $region12: #{tpu_custom_call.1} parent=5 // pred_fallthru
        _
      %p171 = scmp.lt.s32.totalorder %s18, 2
      // Predicated region
      $region17: #{tpu_custom_call.1} parent=5 // pred_check
        %p172 = pneg %p171
      $region18: #{tpu_custom_call.1} parent=5 // pred_check_branch
        %174 = sbr.rel (%p172) target = $region20
      $region19: #{tpu_custom_call.1} parent=5 // pred_region
        // Predicated region
        $region21: #{tpu_custom_call.1} parent=19 // pred_check
          %p175 = pneg %p38
        $region22: #{tpu_custom_call.1} parent=19 // pred_check_branch
          %177 = sbr.rel (%p175) target = $region24
        $region23: #{tpu_custom_call.1} parent=19 // pred_region
          %s178 = sand.u32 %s28, 1
          %s179 = scalar_lea.sflag [#allocation3], %s178
          %s180 = sand.u32 %s28, 1
          %s181 = smul.addr %s180, 96
          %s182 = scalar_lea.vmem [#allocation2], %s181
          %s183 = smul.u32 2, %s18
          %s184 = ssub.s32 3, %s183
          %p185 = scmp.lt.s32.totalorder %s184, 2
          %s186 = scalar_select %p185, %s184, 2
          %s187 = smul.u32 768, %s186
          %s189 = ssub.s32 1536, %s187
          %190 = vsyncadd %s179, %s189
          %p191 = scmp.ne.s32.totalorder 0, %s187
          %s192 = smul.addr %s183, 128
          %s193 = scalar_lea.hbm %s0, %s192
          %s194 = smul.u32 %s186, 8
          %s195 = smul.u32 %s194, 6
          %s196 = sshll.u32 %s182, 4
          %s197 = int_to_ptr.vmem [resolvable:$true] %s196
          %s198 = sshll.u32 %s195, 4
          %202 = dma.hbm_to_vmem [thread:$0]  (%p191), %s193, %s198, %s197, %s179, 384, 256, %s194
        $region24: #{tpu_custom_call.1} parent=19 // pred_fallthru
          _
        // Predicated region
        $region25: #{tpu_custom_call.1} parent=19 // pred_check
          %p203 = pneg %p64
        $region26: #{tpu_custom_call.1} parent=19 // pred_check_branch
          %205 = sbr.rel (%p203) target = $region28
        $region27: #{tpu_custom_call.1} parent=19 // pred_region
          %s206 = smul.u32 2, %s18
          %s207 = ssub.s32 3, %s206
          %p208 = scmp.lt.s32.totalorder %s207, 2
          %s209 = scalar_select %p208, %s207, 2
          %s210 = smul.u32 16, %s209
          %p211 = scmp.lt.s32.totalorder %s206, 2
          %s212 = scalar_select %p211, %s206, 2
          %s213 = scalar_lea.vmem %s1, %s212
          %s214 = smul.u32 2, %s18
          %s215 = ssub.s32 3, %s214
          %p216 = scmp.lt.s32.totalorder %s215, 2
          %s217 = scalar_select %p216, %s215, 2
          %s218 = smul.u32 16, %s217
        $region28: #{tpu_custom_call.1} parent=19 // pred_fallthru
          _
      $region20: #{tpu_custom_call.1} parent=5 // pred_fallthru
        _
      %p219 = scmp.le.s32.totalorder 1, %s18
      %p220 = scmp.lt.s32.totalorder %s18, 3
      %p221 = pnand %p219, %p220
      %p222 = pneg %p221
      // Predicated region
      $region29: #{tpu_custom_call.1} parent=5 // pred_check
        _
      $region30: #{tpu_custom_call.1} parent=5 // pred_check_branch
        %224 = sbr.rel (%p221) target = $region32
      $region31: #{tpu_custom_call.1} parent=5 // pred_region
        %s225 = ssub.s32 %s18, 1
        %s226 = sand.u32 %s31, 1
        %s227 = scalar_lea.sflag [#allocation3], %s226
        %s228 = sand.u32 %s31, 1
        %s229 = smul.addr %s228, 96
        %s230 = scalar_lea.vmem [#allocation2], %s229
        // Predicated region
        $region33: #{tpu_custom_call.1} parent=31 // pred_check
          %p231 = pneg %p44
        $region34: #{tpu_custom_call.1} parent=31 // pred_check_branch
          %233 = sbr.rel (%p231) target = $region36
        $region35: #{tpu_custom_call.1} parent=31 // pred_region
          %234 = dma.done %s227, 1536
        $region36: #{tpu_custom_call.1} parent=31 // pred_fallthru
          _
        // Predicated region
        $region37: #{tpu_custom_call.1} parent=31 // pred_check
          %p235 = pneg %p91
        $region38: #{tpu_custom_call.1} parent=31 // pred_check_branch
          %237 = sbr.rel (%p235) target = $region40
        $region39: #{tpu_custom_call.1} parent=31 // pred_region
          %238 = dma.done [#allocation6], 1536
        $region40: #{tpu_custom_call.1} parent=31 // pred_fallthru
          _
        %s239 = sand.u32 %s31, 1
        %s240 = scalar_lea.sflag [#allocation3], %s239
        %s241 = sand.u32 %s31, 1
        %s242 = smul.addr %s241, 96
        %s243 = scalar_lea.vmem [#allocation2], %s242
        %p244 = pneg %p44
        %p245 = pneg %p41
        %s246 = smul.u32 2, %s23
        %s247 = ssub.s32 3, %s246
        %p248 = scmp.lt.s32.totalorder %s247, 2
        %s249 = scalar_select %p248, %s247, 2
        %s250 = smul.u32 16, %s249
        %p251 = scmp.lt.s32.totalorder %s246, 2
        %s252 = scalar_select %p251, %s246, 2
        %s253 = scalar_lea.vmem %s1, %s252
        %p254 = pneg %p70
        %p255 = pneg %p67
        %p256 = pneg %p91
        %p257 = pneg %p88
        %p258 = pneg %p117
        %p259 = pneg %p114
        %s260 = sand.u32 %s104, 1
        %s261 = scalar_lea.sflag [#allocation4], %s260
        %s262 = sand.u32 %s104, 1
        %s263 = smul.addr %s262, 2
        %s264 = scalar_lea.vmem [#allocation7], %s263
        %p265 = pneg %p143
        %p266 = pneg %p140
        %p267 = scmp.lt.s32.totalorder %s23, 1
        %s268 = scalar_select %p267, %s23, 1
        %s269 = smul.addr %s268, 14
        %s270 = smul.addr %s269, 8
        %s271 = scalar_lea.vmem %s4, %s270
        %s272 = smul.u32 2, %s23
        %s273 = ssub.s32 3, %s272
        %p274 = scmp.lt.s32.totalorder %s273, 2
        %s275 = scalar_select %p274, %s273, 2
        %s276 = smul.u32 768, %s275
        %s277 = smul.u32 2, %s23
        %s278 = ssub.s32 3, %s277
        %p279 = scmp.lt.s32.totalorder %s278, 2
        %s280 = scalar_select %p279, %s278, 2
        %s281 = smul.u32 16, %s280
        %p282 = scmp.lt.s32.totalorder %s277, 2
        %s283 = scalar_select %p282, %s277, 2
        %s284 = scalar_lea.vmem %s1, %s283
        %s285 = smul.u32 2, %s23
        %s286 = ssub.s32 3, %s285
        %p287 = scmp.lt.s32.totalorder %s286, 2
        %s288 = scalar_select %p287, %s286, 2
        %s289 = smul.u32 16, %s288
        %s290 = smul.u32 2, %s23
        %s291 = ssub.s32 3, %s290
        %p292 = scmp.lt.s32.totalorder %s291, 2
        %s293 = scalar_select %p292, %s291, 2
        %s294 = smul.u32 16, %s293
        %p295 = scmp.lt.s32.totalorder %s23, 1
        %s296 = scalar_select %p295, %s23, 1
        %s297 = smul.addr %s296, 14
        %s298 = smul.addr %s297, 8
        %s299 = scalar_lea.vmem %s4, %s298
        %v300 = vld [vmem:[%s230] sm:$0xff]
        %v301 = vld [vmem:[%s230 + $0x8] sm:$0xff]
        %v302 = vld [vmem:[%s230 + $0x10] sm:$0xff]
        %v303 = vld [vmem:[%s230 + $0x18] sm:$0xff]
        %v304 = vld [vmem:[#allocation5] sm:$0xff]
        %v305 = vld [vmem:[#allocation5 + $0x8] sm:$0xff]
        %v306 = vld [vmem:[#allocation5 + $0x10] sm:$0xff]
        %v307 = vld [vmem:[#allocation5 + $0x18] sm:$0xff]
        %v308 = vadd.f32 %v300, %v304
        %v309 = vadd.f32 %v301, %v305
        %v310 = vadd.f32 %v302, %v306
        %v311 = vadd.f32 %v303, %v307
        %s312 = scalar_lea.vmem %s230, 32 [#allocation2]
        %v313 = vld [vmem:[%s312] sm:$0xff]
        %v314 = vld [vmem:[%s312 + $0x8] sm:$0xff]
        %v315 = vld [vmem:[%s312 + $0x10] sm:$0xff]
        %v316 = vld [vmem:[%s312 + $0x18] sm:$0xff]
        %s317 = scalar_lea.vmem [#allocation5], 32
        %v318 = vld [vmem:[%s317] sm:$0xff]
        %v319 = vld [vmem:[%s317 + $0x8] sm:$0xff]
        %v320 = vld [vmem:[%s317 + $0x10] sm:$0xff]
        %v321 = vld [vmem:[%s317 + $0x18] sm:$0xff]
        %v322 = vadd.f32 %v313, %v318
        %v323 = vadd.f32 %v314, %v319
        %v324 = vadd.f32 %v315, %v320
        %v325 = vadd.f32 %v316, %v321
        %s326 = scalar_lea.vmem %s230, 64 [#allocation2]
        %v327 = vld [vmem:[%s326] sm:$0xff]
        %v328 = vld [vmem:[%s326 + $0x8] sm:$0xff]
        %v329 = vld [vmem:[%s326 + $0x10] sm:$0xff]
        %v330 = vld [vmem:[%s326 + $0x18] sm:$0xff]
        %s331 = scalar_lea.vmem [#allocation5], 64
        %v332 = vld [vmem:[%s331] sm:$0xff]
        %v333 = vld [vmem:[%s331 + $0x8] sm:$0xff]
        %v334 = vld [vmem:[%s331 + $0x10] sm:$0xff]
        %v335 = vld [vmem:[%s331 + $0x18] sm:$0xff]
        %v336 = vadd.f32 %v327, %v332
        %v337 = vadd.f32 %v328, %v333
        %v338 = vadd.f32 %v329, %v334
        %v339 = vadd.f32 %v330, %v335
        %v340 = vmax.f32 %v308, %v310
        %v341 = vrot.slane %v340, 4
        %v342 = vmax.f32 %v340, %v341
        %v343 = vrot.slane %v342, 2
        %v344 = vmax.f32 %v342, %v343
        %v345 = vrot.slane %v344, 1
        %v346 = vmax.f32 %v344, %v345
        %v347 = vmax.f32 %v309, %v311
        %v348 = vrot.slane %v347, 4
        %v349 = vmax.f32 %v347, %v348
        %v350 = vrot.slane %v349, 2
        %v351 = vmax.f32 %v349, %v350
        %v352 = vrot.slane %v351, 1
        %v353 = vmax.f32 %v351, %v352
        %v354 = vsub.f32 %v308, %v346
        %v355 = vsub.f32 %v309, %v353
        %v356 = vsub.f32 %v310, %v346
        %v357 = vsub.f32 %v311, %v353
        %v358 = vmul.f32 %v354, 1.442695
        %v359 = vpow.pop %v358
        %v360 = vmul.f32 %v355, 1.442695
        %v361 = vpow.pop %v360
        %v362 = vmul.f32 %v356, 1.442695
        %v363 = vpow.pop %v362
        %v364 = vmul.f32 %v357, 1.442695
        %v365 = vpow.pop %v364
        %v366 = vadd.f32 %v359, %v363
        %v367 = vrot.slane %v366, 4
        %v368 = vadd.f32 %v366, %v367
        %v369 = vrot.slane %v368, 2
        %v370 = vadd.f32 %v368, %v369
        %v371 = vrot.slane %v370, 1
        %v372 = vadd.f32 %v370, %v371
        %v373 = vadd.f32 %v361, %v365
        %v374 = vrot.slane %v373, 4
        %v375 = vadd.f32 %v373, %v374
        %v376 = vrot.slane %v375, 2
        %v377 = vadd.f32 %v375, %v376
        %v378 = vrot.slane %v377, 1
        %v379 = vadd.f32 %v377, %v378
        %v380 = vlog2.pop %v372
        %v381 = vmul.f32 %v380, 0.6931472
        %v382 = vlog2.pop %v379
        %v383 = vmul.f32 %v382, 0.6931472
        %v384 = vrcp.pop %v372
        %v385 = vmul.f32 1.0, %v384
        %v386 = vrcp.pop %v379
        %v387 = vmul.f32 1.0, %v386
        %v388 = vmul.f32 %v359, %v385
        %v389 = vmul.f32 %v361, %v387
        %v390 = vmul.f32 %v363, %v385
        %v391 = vmul.f32 %v365, %v387
        %v392 = vsub.f32 %v354, %v381
        %v393 = vsub.f32 %v355, %v383
        %v394 = vsub.f32 %v356, %v381
        %v395 = vsub.f32 %v357, %v383
        %v396 = vmax.f32 %v336, 0.0
        %v397 = vmax.f32 %v337, 0.0
        %v398 = vmax.f32 %v338, 0.0
        %v399 = vmax.f32 %v339, 0.0
        %v400 = vand.u32 2147483647, %v336
        %v401 = vand.u32 2147483647, %v337
        %v402 = vand.u32 2147483647, %v338
        %v403 = vand.u32 2147483647, %v339
        %v404 = vsub.f32 0.0, %v400
        %v405 = vsub.f32 0.0, %v401
        %v406 = vsub.f32 0.0, %v402
        %v407 = vsub.f32 0.0, %v403
        %v408 = vmul.f32 %v404, 1.442695
        %v409 = vpow.pop %v408
        %v410 = vmul.f32 %v405, 1.442695
        %v411 = vpow.pop %v410
        %v412 = vmul.f32 %v406, 1.442695
        %v413 = vpow.pop %v412
        %v414 = vmul.f32 %v407, 1.442695
        %v415 = vpow.pop %v414
        %v416 = vadd.f32 %v409, 1.0
        %v417 = vlog2.pop %v416
        %v418 = vmul.f32 %v417, 0.6931472
        %v419 = vmul.f32 -0.5, %v409
        %v420 = vadd.f32 %v419, 1.0
        %v421 = vmul.f32 %v420, %v409
        %v422 = vand.u32 2147483647, %v409
        %vm423 = vcmp.lt.f32.partialorder %v422, 0.0004427343
        %v424 = vsel %vm423, %v421, %v418
        %v425 = vadd.f32 %v411, 1.0
        %v426 = vlog2.pop %v425
        %v427 = vmul.f32 %v426, 0.6931472
        %v428 = vmul.f32 -0.5, %v411
        %v429 = vadd.f32 %v428, 1.0
        %v430 = vmul.f32 %v429, %v411
        %v431 = vand.u32 2147483647, %v411
        %vm432 = vcmp.lt.f32.partialorder %v431, 0.0004427343
        %v433 = vsel %vm432, %v430, %v427
        %v434 = vadd.f32 %v413, 1.0
        %v435 = vlog2.pop %v434
        %v436 = vmul.f32 %v435, 0.6931472
        %v437 = vmul.f32 -0.5, %v413
        %v438 = vadd.f32 %v437, 1.0
        %v439 = vmul.f32 %v438, %v413
        %v440 = vand.u32 2147483647, %v413
        %vm441 = vcmp.lt.f32.partialorder %v440, 0.0004427343
        %v442 = vsel %vm441, %v439, %v436
        %v443 = vadd.f32 %v415, 1.0
        %v444 = vlog2.pop %v443
        %v445 = vmul.f32 %v444, 0.6931472
        %v446 = vmul.f32 -0.5, %v415
        %v447 = vadd.f32 %v446, 1.0
        %v448 = vmul.f32 %v447, %v415
        %v449 = vand.u32 2147483647, %v415
        %vm450 = vcmp.lt.f32.partialorder %v449, 0.0004427343
        %v451 = vsel %vm450, %v448, %v445
        %v452 = vadd.f32 %v396, %v424
        %v453 = vadd.f32 %v397, %v433
        %v454 = vadd.f32 %v398, %v442
        %v455 = vadd.f32 %v399, %v451
        %v456 = vmax.f32 %v452, 1e-05
        %v457 = vmax.f32 %v453, 1e-05
        %v458 = vmax.f32 %v454, 1e-05
        %v459 = vmax.f32 %v455, 1e-05
        %v460 = vmin.f32 %v456, 2000.0
        %v461 = vmin.f32 %v457, 2000.0
        %v462 = vmin.f32 %v458, 2000.0
        %v463 = vmin.f32 %v459, 2000.0
        %v464 = vld [vmem:[%s284] sm:$0x3]
        %v465 = vadd.f32 %v464, 0.005
        %v466 = vsub.f32 %v464, 0.005
        %v468 = vlaneseq
        %v469 = vshrl.u32 %v468, 7
        %v470 = vsub.s32 0, %v469
        %v471 = vrot.slane %v466, %v470
        %v472 = vlaneseq
        %v473 = vshrl.u32 %v472, 7
        %v474 = vsub.s32 1, %v473
        %v475 = vrot.slane %v466, %v474
        %v478 = vsub.f32 %v471, %v322
        %v479 = vsub.f32 %v475, %v323
        %v480 = vsub.f32 %v471, %v324
        %v481 = vsub.f32 %v475, %v325
        %v482 = vmul.f32 %v478, %v460
        %v483 = vmul.f32 %v479, %v461
        %v484 = vmul.f32 %v480, %v462
        %v485 = vmul.f32 %v481, %v463
        %v487 = vlaneseq
        %v488 = vshrl.u32 %v487, 7
        %v489 = vsub.s32 0, %v488
        %v490 = vrot.slane %v465, %v489
        %v491 = vlaneseq
        %v492 = vshrl.u32 %v491, 7
        %v493 = vsub.s32 1, %v492
        %v494 = vrot.slane %v465, %v493
        %v497 = vsub.f32 %v490, %v322
        %v498 = vsub.f32 %v494, %v323
        %v499 = vsub.f32 %v490, %v324
        %v500 = vsub.f32 %v494, %v325
        %v501 = vmul.f32 %v497, %v460
        %v502 = vmul.f32 %v498, %v461
        %v503 = vmul.f32 %v499, %v462
        %v504 = vmul.f32 %v500, %v463
        %v505 = vand.u32 2147483647, %v482
        %v506 = vand.u32 2147483647, %v483
        %v507 = vand.u32 2147483647, %v484
        %v508 = vand.u32 2147483647, %v485
        %v509 = vand.u32 2147483647, %v501
        %v510 = vand.u32 2147483647, %v502
        %v511 = vand.u32 2147483647, %v503
        %v512 = vand.u32 2147483647, %v504
        %v513 = vsub.f32 %v501, %v482
        %v514 = vsub.f32 %v502, %v483
        %v515 = vsub.f32 %v503, %v484
        %v516 = vsub.f32 %v504, %v485
        %v517 = vmul.f32 %v501, %v505
        %v518 = vmul.f32 %v502, %v506
        %v519 = vmul.f32 %v503, %v507
        %v520 = vmul.f32 %v504, %v508
        %v521 = vadd.f32 %v513, %v517
        %v522 = vadd.f32 %v514, %v518
        %v523 = vadd.f32 %v515, %v519
        %v524 = vadd.f32 %v516, %v520
        %v525 = vmul.f32 %v509, %v482
        %v526 = vmul.f32 %v510, %v483
        %v527 = vmul.f32 %v511, %v484
        %v528 = vmul.f32 %v512, %v485
        %v529 = vsub.f32 %v521, %v525
        %v530 = vsub.f32 %v522, %v526
        %v531 = vsub.f32 %v523, %v527
        %v532 = vsub.f32 %v524, %v528
        %v533 = vadd.f32 %v509, %v505
        %v534 = vadd.f32 %v510, %v506
        %v535 = vadd.f32 %v511, %v507
        %v536 = vadd.f32 %v512, %v508
        %v537 = vmul.f32 %v509, %v505
        %v538 = vmul.f32 %v510, %v506
        %v539 = vmul.f32 %v511, %v507
        %v540 = vmul.f32 %v512, %v508
        %v541 = vadd.f32 %v533, %v537
        %v542 = vadd.f32 %v534, %v538
        %v543 = vadd.f32 %v535, %v539
        %v544 = vadd.f32 %v536, %v540
        %v545 = vadd.f32 %v541, 1.0
        %v546 = vadd.f32 %v542, 1.0
        %v547 = vadd.f32 %v543, 1.0
        %v548 = vadd.f32 %v544, 1.0
        %v549 = vrcp.pop %v545
        %v550 = vmul.f32 %v529, %v549
        %v551 = vrcp.pop %v546
        %v552 = vmul.f32 %v530, %v551
        %v553 = vrcp.pop %v547
        %v554 = vmul.f32 %v531, %v553
        %v555 = vrcp.pop %v548
        %v556 = vmul.f32 %v532, %v555
        %v557 = vmul.f32 %v359, %v550
        %v558 = vmul.f32 %v361, %v552
        %v559 = vmul.f32 %v363, %v554
        %v560 = vmul.f32 %v365, %v556
        %v561 = vadd.f32 %v557, %v559
        %v562 = vrot.slane %v561, 4
        %v563 = vadd.f32 %v561, %v562
        %v564 = vrot.slane %v563, 2
        %v565 = vadd.f32 %v563, %v564
        %v566 = vrot.slane %v565, 1
        %v567 = vadd.f32 %v565, %v566
        %v568 = vadd.f32 %v558, %v560
        %v569 = vrot.slane %v568, 4
        %v570 = vadd.f32 %v568, %v569
        %v571 = vrot.slane %v570, 2
        %v572 = vadd.f32 %v570, %v571
        %v573 = vrot.slane %v572, 1
        %v574 = vadd.f32 %v572, %v573
        %v575 = vlog2.pop %v567
        %v576 = vmul.f32 %v575, 0.6931472
        %v577 = vlog2.pop %v574
        %v578 = vmul.f32 %v577, 0.6931472
        %v579 = vsub.f32 %v576, %v381
        %v580 = vsub.f32 %v578, %v383
        %v581 = vsub.f32 %v579, 0.6931472
        %v582 = vsub.f32 %v580, 0.6931472
        %v585 = vcombine.low %v581, %v582
        %v587 = vunpack.c.l.s4 1966171168
        %v588 = vunpack.c.0.s8 %v587
        %v589 = vlaneseq
        %v590 = vshrl.u32 %v589, 7
        %v591 = vsub.s32 %v588, %v590
        %v592 = vrot.slane %v585, %v591
        %v594 = vunpack.c.l.s4 1966171168
        %v595 = vunpack.c.0.s8 %v594
        %v596 = vlaneseq
        %v597 = vshrl.u32 %v596, 7
        %v598 = vsub.s32 %v595, %v597
        %v599 = vrot.slane %v592, %v598
        %v601 = vlaneseq
        %vm602 = vcmp.ge.s32.totalorder %v601, 0
        %vm603 = vcmp.lt.s32.totalorder %v601, 256
        %vm604 = vmand %vm602, %vm603
        %605 = vst.msk [vmem:[%s264] sm:$0x3] %vm604, %v599
        %vm606 = vcmp.gt.f32.partialorder %v388, 0.0
        %vm607 = vcmp.gt.f32.partialorder %v389, 0.0
        %vm608 = vcmp.gt.f32.partialorder %v390, 0.0
        %vm609 = vcmp.gt.f32.partialorder %v391, 0.0
        %v610 = vmul.f32 %v388, %v392
        %v611 = vmul.f32 %v389, %v393
        %v612 = vmul.f32 %v390, %v394
        %v613 = vmul.f32 %v391, %v395
        %v614 = vsel %vm606, %v610, 0.0
        %v615 = vsel %vm607, %v611, 0.0
        %v616 = vsel %vm608, %v612, 0.0
        %v617 = vsel %vm609, %v613, 0.0
        %v618 = vadd.f32 %v614, %v616
        %v619 = vrot.slane %v618, 4
        %v620 = vadd.f32 %v618, %v619
        %v621 = vrot.slane %v620, 2
        %v622 = vadd.f32 %v620, %v621
        %v623 = vrot.slane %v622, 1
        %v624 = vadd.f32 %v622, %v623
        %v625 = vadd.f32 %v615, %v617
        %v626 = vrot.slane %v625, 4
        %v627 = vadd.f32 %v625, %v626
        %v628 = vrot.slane %v627, 2
        %v629 = vadd.f32 %v627, %v628
        %v630 = vrot.slane %v629, 1
        %v631 = vadd.f32 %v629, %v630
        %v632 = vsub.f32 0.0, %v624
        %v633 = vsub.f32 0.0, %v631
        %p634 = scmp.eq.s32.totalorder %s23, 1
        %p635 = scmp.ne.s32.totalorder %s23, 1
        // Predicated region
        $region41: #{tpu_custom_call.1} parent=31 // pred_check
          %p636 = pneg %p635
        $region42: #{tpu_custom_call.1} parent=31 // pred_check_branch
          %638 = sbr.rel (%p636) target = $region44
        $region43: #{tpu_custom_call.1} parent=31 // pred_region
          %v639 = vadd.f32 %v388, %v389
          %640 = vadd.xlane.f32.xlu0 %v639
          %v641 = vpop.xlane.xlu0 %640
          %v642 = vadd.f32 %v390, %v391
          %643 = vadd.xlane.f32.xlu0 %v642
          %v644 = vpop.xlane.xlu0 %643
          %vm645 = vcmask 7168
          %646 = vst.msk [vmem:[%s299] sm:$0xff] %vm645, %v641
          %647 = vst.msk [vmem:[%s299 + $0x8] sm:$0xff] %vm645, %v644
          %v648 = vmin.f32 %v460, %v461
          %649 = vmin.xlane.f32.xlu0 %v648
          %v650 = vpop.xlane.xlu0 %649
          %v651 = vmin.f32 %v462, %v463
          %652 = vmin.xlane.f32.xlu0 %v651
          %v653 = vpop.xlane.xlu0 %652
          %654 = vst.msk [vmem:[%s299 + $0x10] sm:$0xff] %vm645, %v650
          %655 = vst.msk [vmem:[%s299 + $0x18] sm:$0xff] %vm645, %v653
          %v656 = vmax.f32 %v460, %v461
          %657 = vmax.xlane.f32.xlu0 %v656
          %v658 = vpop.xlane.xlu0 %657
          %v659 = vmax.f32 %v462, %v463
          %660 = vmax.xlane.f32.xlu0 %v659
          %v661 = vpop.xlane.xlu0 %660
          %662 = vst.msk [vmem:[%s299 + $0x20] sm:$0xff] %vm645, %v658
          %663 = vst.msk [vmem:[%s299 + $0x28] sm:$0xff] %vm645, %v661
          %v664 = vmin.f32 %v322, %v323
          %665 = vmin.xlane.f32.xlu0 %v664
          %v666 = vpop.xlane.xlu0 %665
          %v667 = vmin.f32 %v324, %v325
          %668 = vmin.xlane.f32.xlu0 %v667
          %v669 = vpop.xlane.xlu0 %668
          %670 = vst.msk [vmem:[%s299 + $0x30] sm:$0xff] %vm645, %v666
          %671 = vst.msk [vmem:[%s299 + $0x38] sm:$0xff] %vm645, %v669
          %v672 = vmax.f32 %v322, %v323
          %673 = vmax.xlane.f32.xlu0 %v672
          %v674 = vpop.xlane.xlu0 %673
          %v675 = vmax.f32 %v324, %v325
          %676 = vmax.xlane.f32.xlu0 %v675
          %v677 = vpop.xlane.xlu0 %676
          %678 = vst.msk [vmem:[%s299 + $0x40] sm:$0xff] %vm645, %v674
          %679 = vst.msk [vmem:[%s299 + $0x48] sm:$0xff] %vm645, %v677
          %v680 = vmin.f32 %v632, %v633
          %681 = vmin.xlane.f32.xlu0 %v680
          %v682 = vpop.xlane.xlu0 %681
          %683 = vst.msk [vmem:[%s299 + $0x50] sm:$0xff] %vm645, %v682
          %684 = vst.msk [vmem:[%s299 + $0x58] sm:$0xff] %vm645, %v682
          %v685 = vmax.f32 %v632, %v633
          %686 = vmax.xlane.f32.xlu0 %v685
          %v687 = vpop.xlane.xlu0 %686
          %688 = vst.msk [vmem:[%s299 + $0x60] sm:$0xff] %vm645, %v687
          %689 = vst.msk [vmem:[%s299 + $0x68] sm:$0xff] %vm645, %v687
        $region44: #{tpu_custom_call.1} parent=31 // pred_fallthru
          _
        // Predicated region
        $region45: #{tpu_custom_call.1} parent=31 // pred_check
          %p690 = pneg %p634
        $region46: #{tpu_custom_call.1} parent=31 // pred_check_branch
          %692 = sbr.rel (%p690) target = $region48
        $region47: #{tpu_custom_call.1} parent=31 // pred_region
          %v693 = vlaneseq
          %v694 = vand.u32 %v693, 127
          %v695 = vadd.s32 %v694, 128
          %vm696 = vcmp.lt.s32.totalorder %v694, 44
          %vm697 = vcmp.lt.s32.totalorder %v695, 44
          %v698 = vsel %vm696, 1, 0
          %v699 = vsel %vm697, 1, 0
          %vm700 = vcmp.eq.s32.totalorder %v698, 1
          %vm701 = vcmp.eq.s32.totalorder %v699, 1
          %v702 = vsel %vm700, %v388, 0.0
          %v703 = vsel %vm701, %v389, 0.0
          %v704 = vsel %vm700, %v390, 0.0
          %v705 = vsel %vm701, %v391, 0.0
          %v706 = vsel %vm700, %v460, inf
          %v707 = vsel %vm701, %v461, inf
          %v708 = vsel %vm700, %v462, inf
          %v709 = vsel %vm701, %v463, inf
          %v710 = vsel %vm700, %v460, -inf
          %v711 = vsel %vm701, %v461, -inf
          %v712 = vsel %vm700, %v462, -inf
          %v713 = vsel %vm701, %v463, -inf
          %v714 = vsel %vm700, %v322, inf
          %v715 = vsel %vm701, %v323, inf
          %v716 = vsel %vm700, %v324, inf
          %v717 = vsel %vm701, %v325, inf
          %v718 = vsel %vm700, %v322, -inf
          %v719 = vsel %vm701, %v323, -inf
          %v720 = vsel %vm700, %v324, -inf
          %v721 = vsel %vm701, %v325, -inf
          %v722 = vsel %vm696, %v632, inf
          %v723 = vsel %vm697, %v633, inf
          %v724 = vsel %vm696, %v632, -inf
          %v725 = vsel %vm697, %v633, -inf
          %v726 = vadd.f32 %v702, %v703
          %727 = vadd.xlane.f32.xlu0 %v726
          %v728 = vpop.xlane.xlu0 %727
          %v729 = vadd.f32 %v704, %v705
          %730 = vadd.xlane.f32.xlu0 %v729
          %v731 = vpop.xlane.xlu0 %730
          %vm732 = vcmask 7168
          %733 = vst.msk [vmem:[%s299] sm:$0xff] %vm732, %v728
          %734 = vst.msk [vmem:[%s299 + $0x8] sm:$0xff] %vm732, %v731
          %v735 = vmin.f32 %v706, %v707
          %736 = vmin.xlane.f32.xlu0 %v735
          %v737 = vpop.xlane.xlu0 %736
          %v738 = vmin.f32 %v708, %v709
          %739 = vmin.xlane.f32.xlu0 %v738
          %v740 = vpop.xlane.xlu0 %739
          %741 = vst.msk [vmem:[%s299 + $0x10] sm:$0xff] %vm732, %v737
          %742 = vst.msk [vmem:[%s299 + $0x18] sm:$0xff] %vm732, %v740
          %v743 = vmax.f32 %v710, %v711
          %744 = vmax.xlane.f32.xlu0 %v743
          %v745 = vpop.xlane.xlu0 %744
          %v746 = vmax.f32 %v712, %v713
          %747 = vmax.xlane.f32.xlu0 %v746
          %v748 = vpop.xlane.xlu0 %747
          %749 = vst.msk [vmem:[%s299 + $0x20] sm:$0xff] %vm732, %v745
          %750 = vst.msk [vmem:[%s299 + $0x28] sm:$0xff] %vm732, %v748
          %v751 = vmin.f32 %v714, %v715
          %752 = vmin.xlane.f32.xlu0 %v751
          %v753 = vpop.xlane.xlu0 %752
          %v754 = vmin.f32 %v716, %v717
          %755 = vmin.xlane.f32.xlu0 %v754
          %v756 = vpop.xlane.xlu0 %755
          %757 = vst.msk [vmem:[%s299 + $0x30] sm:$0xff] %vm732, %v753
          %758 = vst.msk [vmem:[%s299 + $0x38] sm:$0xff] %vm732, %v756
          %v759 = vmax.f32 %v718, %v719
          %760 = vmax.xlane.f32.xlu0 %v759
          %v761 = vpop.xlane.xlu0 %760
          %v762 = vmax.f32 %v720, %v721
          %763 = vmax.xlane.f32.xlu0 %v762
          %v764 = vpop.xlane.xlu0 %763
          %765 = vst.msk [vmem:[%s299 + $0x40] sm:$0xff] %vm732, %v761
          %766 = vst.msk [vmem:[%s299 + $0x48] sm:$0xff] %vm732, %v764
          %v767 = vmin.f32 %v722, %v723
          %768 = vmin.xlane.f32.xlu0 %v767
          %v769 = vpop.xlane.xlu0 %768
          %770 = vst.msk [vmem:[%s299 + $0x50] sm:$0xff] %vm732, %v769
          %771 = vst.msk [vmem:[%s299 + $0x58] sm:$0xff] %vm732, %v769
          %v772 = vmax.f32 %v724, %v725
          %773 = vmax.xlane.f32.xlu0 %v772
          %v774 = vpop.xlane.xlu0 %773
          %775 = vst.msk [vmem:[%s299 + $0x60] sm:$0xff] %vm732, %v774
          %776 = vst.msk [vmem:[%s299 + $0x68] sm:$0xff] %vm732, %v774
        $region48: #{tpu_custom_call.1} parent=31 // pred_fallthru
          _
        %s777 = sand.u32 %s104, 1
        %s778 = scalar_lea.sflag [#allocation4], %s777
        %s779 = sand.u32 %s104, 1
        %s780 = smul.addr %s779, 2
        %s781 = scalar_lea.vmem [#allocation7], %s780
        %p782 = scmp.lt.s32.totalorder %s23, 1
        %s783 = scalar_select %p782, %s23, 1
        %s784 = smul.addr %s783, 14
        %s785 = smul.addr %s784, 8
        %s786 = scalar_lea.vmem %s4, %s785
        // Predicated region
        $region49: #{tpu_custom_call.1} parent=31 // pred_check
          %p787 = pneg %p114
        $region50: #{tpu_custom_call.1} parent=31 // pred_check_branch
          %789 = sbr.rel (%p787) target = $region52
        $region51: #{tpu_custom_call.1} parent=31 // pred_region
          %s790 = smul.u32 2, %s23
          %s791 = ssub.s32 3, %s790
          %p792 = scmp.lt.s32.totalorder %s791, 2
          %s793 = scalar_select %p792, %s791, 2
          %s794 = smul.u32 16, %s793
          %s796 = ssub.s32 32, %s794
          %797 = vsyncadd %s778, %s796
          %p798 = scmp.ne.s32.totalorder 0, %s794
          %s799 = smul.addr %s790, 16
          %s800 = scalar_lea.hbm %s3, %s799
          %s801 = sshll.u32 %s793, 4
          %s802 = sshll.u32 %s781, 4
          %s803 = int_to_ptr.vmem [resolvable:$true] %s802
          %805 = dma.vmem_to_hbm [thread:$0]  (%p798), %s803, %s801, %s800, %s778
        $region52: #{tpu_custom_call.1} parent=31 // pred_fallthru
          _
        // Predicated region
        $region53: #{tpu_custom_call.1} parent=31 // pred_check
          %p806 = pneg %p140
        $region54: #{tpu_custom_call.1} parent=31 // pred_check_branch
          %808 = sbr.rel (%p806) target = $region56
        $region55: #{tpu_custom_call.1} parent=31 // pred_region
          _
        $region56: #{tpu_custom_call.1} parent=31 // pred_fallthru
          _
      $region32: #{tpu_custom_call.1} parent=5 // pred_fallthru
        _
      %p809 = scmp.le.s32.totalorder 2, %s18
      // Predicated region
      $region57: #{tpu_custom_call.1} parent=5 // pred_check
        %p810 = pneg %p809
      $region58: #{tpu_custom_call.1} parent=5 // pred_check_branch
        %812 = sbr.rel (%p810) target = $region60
      $region59: #{tpu_custom_call.1} parent=5 // pred_region
        %s813 = ssub.s32 %s18, 2
        // Predicated region
        $region61: #{tpu_custom_call.1} parent=59 // pred_check
          %p814 = pneg %p120
        $region62: #{tpu_custom_call.1} parent=59 // pred_check_branch
          %816 = sbr.rel (%p814) target = $region64
        $region63: #{tpu_custom_call.1} parent=59 // pred_region
          %s817 = sand.u32 %s105, 1
          %s818 = scalar_lea.sflag [#allocation4], %s817
          %s819 = sand.u32 %s105, 1
          %s820 = smul.addr %s819, 2
          %s821 = scalar_lea.vmem [#allocation7], %s820
          %822 = dma.done %s818, 32
        $region64: #{tpu_custom_call.1} parent=59 // pred_fallthru
          _
        // Predicated region
        $region65: #{tpu_custom_call.1} parent=59 // pred_check
          %p823 = pneg %p146
        $region66: #{tpu_custom_call.1} parent=59 // pred_check_branch
          %825 = sbr.rel (%p823) target = $region68
        $region67: #{tpu_custom_call.1} parent=59 // pred_region
          %p826 = scmp.lt.s32.totalorder %s24, 1
          %s827 = scalar_select %p826, %s24, 1
          %s828 = smul.addr %s827, 14
          %s829 = smul.addr %s828, 8
          %s830 = scalar_lea.vmem %s4, %s829
        $region68: #{tpu_custom_call.1} parent=59 // pred_fallthru
          _
      $region60: #{tpu_custom_call.1} parent=5 // pred_fallthru
        _
    $region6: #{tpu_custom_call.1} parent=1 // loop_footer
      %s22 = sadd.s32 1, %s18
    $region7: #{tpu_custom_call.1} parent=1 // loop_footer_branch
      %17 = sbr.rel target = $region3
    $region8: #{tpu_custom_call.1} parent=1 // loop_exit
      _
    %831 = vsyncpa [#allocation3], 1
    %s832 = scalar_lea.sflag [#allocation3], 1
    %833 = vsyncpa %s832, 1
    %834 = vsyncpa [#allocation6], 1
    %835 = vsyncpa [#allocation4], 1
    %s836 = scalar_lea.sflag [#allocation4], 1
    %837 = vsyncpa %s836, 1

</llo_original>
